<compile_context>
chip_gen: v7x
topology: tpu7x:2x2x1
jax: 0.10.0
libtpu: 0.0.40
codegen_flags: <defaults>
</compile_context>

<pallas_src>
import functools

import jax
import jax.numpy as jnp
from jax.experimental import pallas as pl
from jax.experimental.pallas import tpu as pltpu

LANES = 128
STRIP = 8               # one (8, 128) f32 vreg per input per inner-loop step
MAX_BLOCK_ROWS = 4096   # (4096, 128) f32 = 2 MiB per input block


def _round_up(x, m):
    return ((x + m - 1) // m) * m


@functools.lru_cache(maxsize=None)
def _tensorcores_per_device():
    """Best-effort detection of megacore chips (2 TCs behind one device)."""
    try:
        kind = jax.devices()[0].device_kind.lower()
    except Exception:
        return 1
    if any(tag in kind for tag in ("v4", "v5p", "v7")):
        return 2
    return 1


def _wbce_kernel(logit_ref, truth_ref, out_ref, *,
                 rows_total, block_rows, blocks_per_core, unroll):
    c = pl.program_id(0)   # "core" (parallel) axis
    i = pl.program_id(1)   # reduction (arbitrary) axis

    @pl.when(i == 0)
    def _init():
        out_ref[...] = jnp.zeros_like(out_ref)

    block_start = (c * blocks_per_core + i) * block_rows
    n_strips = block_rows // STRIP

    def run(masked):
        def body(s, carry):
            acc_pos, acc_clog, acc_pclog = carry
            r0 = pl.multiple_of(s * STRIP, STRIP)
            p = logit_ref[pl.ds(r0, STRIP), :].astype(jnp.float32)
            t = truth_ref[pl.ds(r0, STRIP), :].astype(jnp.float32)
            if masked:
                # Rows past the end of the (rows_total, 128) array hold
                # undefined VMEM (partial boundary block / clamped duplicate
                # block).  0-fill is self-excluding: pos = 0, q = 1, log q = 0,
                # so invalid rows contribute nothing to any accumulator.
                row = jax.lax.broadcasted_iota(jnp.int32, (STRIP, LANES), 0)
                valid = (block_start + r0 + row) < rows_total
                p = jnp.where(valid, p, 0.0)
                t = jnp.where(valid, t, 0.0)
            posb = t > 0.5
            q = jnp.where(posb, p, 1.0 - p)
            clog = jnp.maximum(jnp.log(q), -100.0)   # same clamp as F.bce
            pos = posb.astype(jnp.float32)
            return (acc_pos + pos, acc_clog + clog, acc_pclog + pos * clog)

        zero = jnp.zeros((STRIP, LANES), jnp.float32)
        acc_pos, acc_clog, acc_pclog = jax.lax.fori_loop(
            0, n_strips, body, (zero, zero, zero), unroll=unroll)
        out_ref[0, 0] += acc_pos     # pos count          (vector partial)
        out_ref[0, 1] += acc_clog    # sum(clog)          (vector partial)
        out_ref[0, 2] += acc_pclog   # sum(pos * clog)    (vector partial)

    block_end = block_start + block_rows

    @pl.when(block_end <= rows_total)
    def _fast():          # interior block: no mask ops at all
        run(False)

    @pl.when(block_end > rows_total)
    def _slow():          # last (partial) block and clamped duplicates
        run(True)


def weighted_bce(logit_pixel, truth_pixel, weights=(0.4, 0.6), *,
                 max_block_rows=MAX_BLOCK_ROWS):
    assert logit_pixel.shape == truth_pixel.shape
    logit = logit_pixel.reshape(-1)
    truth = truth_pixel.reshape(-1)
    n = logit.shape[0]

    rows = n // LANES          # aligned prefix handled by the kernel
    rem = n - rows * LANES     # < 128-element tail handled in the wrapper

    pos_cnt = jnp.float32(0.0)
    clog_sum = jnp.float32(0.0)
    pclog_sum = jnp.float32(0.0)

    if rows > 0:
        aligned = rows * LANES
        # Free reshape when already lane-aligned; otherwise slice only the
        # contiguous prefix (no pad, no 0.5-fill write pass).
        logit2 = (logit if rem == 0 else logit[:aligned]).reshape(rows, LANES)
        truth2 = (truth if rem == 0 else truth[:aligned]).reshape(rows, LANES)

        block_rows = min(max_block_rows, _round_up(rows, 8))
        total_blocks = pl.cdiv(rows, block_rows)
        tc = _tensorcores_per_device()
        num_cores = tc if total_blocks >= tc else 1
        blocks_per_core = pl.cdiv(total_blocks, num_cores)

        def in_map(c, i):
            # Clamp so an over-covering grid point re-reads the last block;
            # its rows are fully masked out in-kernel.
            return (jnp.minimum(c * blocks_per_core + i, total_blocks - 1), 0)

        kernel = functools.partial(
            _wbce_kernel,
            rows_total=rows,
            block_rows=block_rows,
            blocks_per_core=blocks_per_core,
            unroll=min(8, block_rows // STRIP),
        )

        bytes_accessed = (logit2.size * logit2.dtype.itemsize
                          + truth2.size * truth2.dtype.itemsize
                          + num_cores * 3 * 8 * LANES * 4)

        partials = pl.pallas_call(
            kernel,
            out_shape=jax.ShapeDtypeStruct((num_cores, 3, 8, LANES),
                                           jnp.float32),
            grid_spec=pltpu.PrefetchScalarGridSpec(
                num_scalar_prefetch=0,
                grid=(num_cores, blocks_per_core),
                in_specs=[
                    pl.BlockSpec((block_rows, LANES), in_map),
                    pl.BlockSpec((block_rows, LANES), in_map),
                ],
                out_specs=pl.BlockSpec((1, 3, 8, LANES),
                                       lambda c, i: (c, 0, 0, 0)),
            ),
            compiler_params=pltpu.CompilerParams(
                dimension_semantics=("parallel", "arbitrary"),
            ),
            cost_estimate=pl.CostEstimate(
                flops=10 * rows * LANES,
                transcendentals=rows * LANES,
                bytes_accessed=bytes_accessed,
            ),
        )(logit2, truth2)

        sums = jnp.sum(partials, axis=(0, 2, 3))   # tiny (3,) final reduce
        pos_cnt = pos_cnt + sums[0]
        clog_sum = clog_sum + sums[1]
        pclog_sum = pclog_sum + sums[2]

    if rem > 0:
        # Tail (< 128 elements): plain JAX, same single-log formulation.
        tp = logit[rows * LANES:].astype(jnp.float32)
        tt = truth[rows * LANES:].astype(jnp.float32)
        posb = tt > 0.5
        q = jnp.where(posb, tp, 1.0 - tp)
        clog = jnp.maximum(jnp.log(q), -100.0)
        pos = posb.astype(jnp.float32)
        pos_cnt = pos_cnt + pos.sum()
        clog_sum = clog_sum + clog.sum()
        pclog_sum = pclog_sum + (pos * clog).sum()

    # Binary-truth assumption: every element is pos or neg.
    w_pos, w_neg = float(weights[0]), float(weights[1])
    pos_bce = -pclog_sum
    neg_bce = -(clog_sum - pclog_sum)
    neg_cnt = jnp.float32(n) - pos_cnt
    return (w_pos * pos_bce / (pos_cnt + 1e-12)
            + w_neg * neg_bce / (neg_cnt + 1e-12))


def _reference(logit_pixel, truth_pixel, weights=(0.4, 0.6)):
    # Mirrors the PyTorch module exactly (two-log BCE with -100 clamp).
    logit = logit_pixel.reshape(-1).astype(jnp.float32)
    truth = truth_pixel.reshape(-1).astype(jnp.float32)
    log_p = jnp.maximum(jnp.log(logit), -100.0)
    log_1mp = jnp.maximum(jnp.log(1.0 - logit), -100.0)
    bce = -(truth * log_p + (1.0 - truth) * log_1mp)
    pos = (truth > 0.5).astype(jnp.float32)
    neg = (truth < 0.5).astype(jnp.float32)
    pos_w = pos.sum() + 1e-12
    neg_w = neg.sum() + 1e-12
    return (weights[0] * pos * bce / pos_w
            + weights[1] * neg * bce / neg_w).sum()


if __name__ == "__main__":
    key = jax.random.PRNGKey(0)

    cases = [
        # (shape, max_block_rows)
        ((2, 4, 16, 16), MAX_BLOCK_ROWS),  # primary NCHW case: single aligned block
        ((2, 4, 64, 64), 64),              # multi-block grid: interior fast path + accumulation
        ((1, 1, 33, 17), MAX_BLOCK_ROWS),  # rows=4 partial masked block + 49-elem wrapper tail
        ((1, 1, 7, 9), MAX_BLOCK_ROWS),    # < 128 elements: wrapper-only path
    ]
    for shape, mbr in cases:
        k1, k2, key = jax.random.split(key, 3)
        logit_pixel = jax.nn.sigmoid(jax.random.normal(k1, shape, jnp.float32))
        truth_pixel = jax.random.bernoulli(k2, 0.3, shape).astype(jnp.float32)

        loss = jax.block_until_ready(
            weighted_bce(logit_pixel, truth_pixel, max_block_rows=mbr))
        ref = _reference(logit_pixel, truth_pixel)
        assert jnp.allclose(loss, ref, rtol=1e-4, atol=1e-6), (shape, loss, ref)

    print("KERNEL_OK")
</pallas_src>

<mosaic_0001>
module attributes {stable_mosaic.version = 11 : i64} {
  func.func @_wbce_kernel(%arg0: i32, %arg1: i32, %arg2: memref<16x128xf32, #tpu.memory_space<vmem>>, %arg3: memref<16x128xf32, #tpu.memory_space<vmem>>, %arg4: memref<1x3x8x128xf32, #tpu.memory_space<vmem>>) attributes {dimension_semantics = [#tpu.dimension_semantics<parallel>, #tpu.dimension_semantics<arbitrary>], iteration_bounds = array<i64: 1, 1>, scalar_prefetch = 0 : i64, scratch_operands = 0 : i64, tpu.core_type = #tpu.core_type<tc>, window_params = [{transform_indices = @transform_0, window_bounds = array<i64: 16, 128>}, {transform_indices = @transform_1, window_bounds = array<i64: 16, 128>}, {transform_indices = @transform_2, window_bounds = array<i64: 1, 3, 8, 128>}]} {
    %c0_i32 = arith.constant 0 : i32
    %0 = arith.cmpi eq, %arg1, %c0_i32 : i32
    %1 = arith.extui %0 : i1 to i32
    %c0_i32_0 = arith.constant 0 : i32
    %2 = arith.cmpi ne, %1, %c0_i32_0 : i32
    scf.if %2 {
      %cst = arith.constant 0.000000e+00 : f32
      %13 = vector.broadcast %cst : f32 to vector<1x3x8x128xf32>
      %c0 = arith.constant 0 : index
      %c0_6 = arith.constant 0 : index
      %c0_7 = arith.constant 0 : index
      %c0_8 = arith.constant 0 : index
      %14 = vector.load %arg4[%c0, %c0_6, %c0_7, %c0_8] : memref<1x3x8x128xf32, #tpu.memory_space<vmem>>, vector<1x3x8x128xf32>
      tpu.vector_store %arg4[%c0, %c0_6, %c0_7, %c0_8], %13 {strides = array<i32>} : memref<1x3x8x128xf32, #tpu.memory_space<vmem>>, vector<1x3x8x128xf32>,
    } else {
    }
    %c1_i32 = arith.constant 1 : i32
    %3 = arith.muli %arg0, %c1_i32 : i32
    %4 = arith.addi %3, %arg1 : i32
    %c16_i32 = arith.constant 16 : i32
    %5 = arith.muli %4, %c16_i32 : i32
    %c16_i32_1 = arith.constant 16 : i32
    %6 = arith.addi %5, %c16_i32_1 : i32
    %c16_i32_2 = arith.constant 16 : i32
    %7 = arith.cmpi sle, %6, %c16_i32_2 : i32
    %8 = arith.extui %7 : i1 to i32
    %c0_i32_3 = arith.constant 0 : i32
    %9 = arith.cmpi ne, %8, %c0_i32_3 : i32
    scf.if %9 {
      %cst = arith.constant 0.000000e+00 : f32
      %13 = vector.broadcast %cst : f32 to vector<8x128xf32>
      %c0_i32_6 = arith.constant 0 : i32
      %c8_i32 = arith.constant 8 : i32
      %14 = arith.muli %c0_i32_6, %c8_i32 : i32
      %15 = tpu.assume_multiple %14, 8 : i32
      %16 = arith.index_cast %15 : i32 to index
      %c0 = arith.constant 0 : index
      %17 = vector.load %arg2[%16, %c0] : memref<16x128xf32, #tpu.memory_space<vmem>>, vector<8x128xf32>
      %18 = arith.index_cast %15 : i32 to index
      %c0_7 = arith.constant 0 : index
      %19 = vector.load %arg3[%18, %c0_7] : memref<16x128xf32, #tpu.memory_space<vmem>>, vector<8x128xf32>
      %cst_8 = arith.constant 5.000000e-01 : f32
      %20 = vector.broadcast %cst_8 : f32 to vector<8x128xf32>
      %21 = arith.cmpf ogt, %19, %20 : vector<8x128xf32>
      %cst_9 = arith.constant 1.000000e+00 : f32
      %22 = vector.broadcast %cst_9 : f32 to vector<8x128xf32>
      %23 = arith.subf %22, %17 : vector<8x128xf32>
      %24 = arith.select %21, %17, %23 : vector<8x128xi1>, vector<8x128xf32>
      %25 = math.log %24 : vector<8x128xf32>
      %cst_10 = arith.constant -1.000000e+02 : f32
      %26 = vector.broadcast %cst_10 : f32 to vector<8x128xf32>
      %27 = arith.maximumf %25, %26 : vector<8x128xf32>
      %28 = arith.extui %21 : vector<8x128xi1> to vector<8x128xi32>
      %29 = arith.sitofp %28 : vector<8x128xi32> to vector<8x128xf32>
      %30 = arith.addf %13, %29 : vector<8x128xf32>
      %31 = arith.addf %13, %27 : vector<8x128xf32>
      %32 = arith.mulf %29, %27 : vector<8x128xf32>
      %33 = arith.addf %13, %32 : vector<8x128xf32>
      %c1_i32_11 = arith.constant 1 : i32
      %c8_i32_12 = arith.constant 8 : i32
      %34 = arith.muli %c1_i32_11, %c8_i32_12 : i32
      %35 = tpu.assume_multiple %34, 8 : i32
      %36 = arith.index_cast %35 : i32 to index
      %c0_13 = arith.constant 0 : index
      %37 = vector.load %arg2[%36, %c0_13] : memref<16x128xf32, #tpu.memory_space<vmem>>, vector<8x128xf32>
      %38 = arith.index_cast %35 : i32 to index
      %c0_14 = arith.constant 0 : index
      %39 = vector.load %arg3[%38, %c0_14] : memref<16x128xf32, #tpu.memory_space<vmem>>, vector<8x128xf32>
      %cst_15 = arith.constant 5.000000e-01 : f32
      %40 = vector.broadcast %cst_15 : f32 to vector<8x128xf32>
      %41 = arith.cmpf ogt, %39, %40 : vector<8x128xf32>
      %cst_16 = arith.constant 1.000000e+00 : f32
      %42 = vector.broadcast %cst_16 : f32 to vector<8x128xf32>
      %43 = arith.subf %42, %37 : vector<8x128xf32>
      %44 = arith.select %41, %37, %43 : vector<8x128xi1>, vector<8x128xf32>
      %45 = math.log %44 : vector<8x128xf32>
      %cst_17 = arith.constant -1.000000e+02 : f32
      %46 = vector.broadcast %cst_17 : f32 to vector<8x128xf32>
      %47 = arith.maximumf %45, %46 : vector<8x128xf32>
      %48 = arith.extui %41 : vector<8x128xi1> to vector<8x128xi32>
      %49 = arith.sitofp %48 : vector<8x128xi32> to vector<8x128xf32>
      %50 = arith.addf %30, %49 : vector<8x128xf32>
      %51 = arith.addf %31, %47 : vector<8x128xf32>
      %52 = arith.mulf %49, %47 : vector<8x128xf32>
      %53 = arith.addf %33, %52 : vector<8x128xf32>
      %c2_i32 = arith.constant 2 : i32
      %c0_18 = arith.constant 0 : index
      %c0_19 = arith.constant 0 : index
      %c0_20 = arith.constant 0 : index
      %c0_21 = arith.constant 0 : index
      %54 = vector.load %arg4[%c0_18, %c0_19, %c0_20, %c0_21] : memref<1x3x8x128xf32, #tpu.memory_space<vmem>>, vector<1x1x8x128xf32>
      %55 = vector.shape_cast %54 : vector<1x1x8x128xf32> to vector<8x128xf32>
      %56 = arith.addf %55, %50 : vector<8x128xf32>
      %c0_22 = arith.constant 0 : index
      %c0_23 = arith.constant 0 : index
      %c0_24 = arith.constant 0 : index
      %c0_25 = arith.constant 0 : index
      %57 = vector.load %arg4[%c0_22, %c0_23, %c0_24, %c0_25] : memref<1x3x8x128xf32, #tpu.memory_space<vmem>>, vector<1x1x8x128xf32>
      %58 = vector.shape_cast %57 : vector<1x1x8x128xf32> to vector<8x128xf32>
      %59 = vector.shape_cast %56 : vector<8x128xf32> to vector<1x1x8x128xf32>
      tpu.vector_store %arg4[%c0_22, %c0_23, %c0_24, %c0_25], %59 {strides = array<i32>} : memref<1x3x8x128xf32, #tpu.memory_space<vmem>>, vector<1x1x8x128xf32>,
      %c0_26 = arith.constant 0 : index
      %c1 = arith.constant 1 : index
      %c0_27 = arith.constant 0 : index
      %c0_28 = arith.constant 0 : index
      %60 = vector.load %arg4[%c0_26, %c1, %c0_27, %c0_28] : memref<1x3x8x128xf32, #tpu.memory_space<vmem>>, vector<1x1x8x128xf32>
      %61 = vector.shape_cast %60 : vector<1x1x8x128xf32> to vector<8x128xf32>
      %62 = arith.addf %61, %51 : vector<8x128xf32>
      %c0_29 = arith.constant 0 : index
      %c1_30 = arith.constant 1 : index
      %c0_31 = arith.constant 0 : index
      %c0_32 = arith.constant 0 : index
      %63 = vector.load %arg4[%c0_29, %c1_30, %c0_31, %c0_32] : memref<1x3x8x128xf32, #tpu.memory_space<vmem>>, vector<1x1x8x128xf32>
      %64 = vector.shape_cast %63 : vector<1x1x8x128xf32> to vector<8x128xf32>
      %65 = vector.shape_cast %62 : vector<8x128xf32> to vector<1x1x8x128xf32>
      tpu.vector_store %arg4[%c0_29, %c1_30, %c0_31, %c0_32], %65 {strides = array<i32>} : memref<1x3x8x128xf32, #tpu.memory_space<vmem>>, vector<1x1x8x128xf32>,
      %c0_33 = arith.constant 0 : index
      %c2 = arith.constant 2 : index
      %c0_34 = arith.constant 0 : index
      %c0_35 = arith.constant 0 : index
      %66 = vector.load %arg4[%c0_33, %c2, %c0_34, %c0_35] : memref<1x3x8x128xf32, #tpu.memory_space<vmem>>, vector<1x1x8x128xf32>
      %67 = vector.shape_cast %66 : vector<1x1x8x128xf32> to vector<8x128xf32>
      %68 = arith.addf %67, %53 : vector<8x128xf32>
      %c0_36 = arith.constant 0 : index
      %c2_37 = arith.constant 2 : index
      %c0_38 = arith.constant 0 : index
      %c0_39 = arith.constant 0 : index
      %69 = vector.load %arg4[%c0_36, %c2_37, %c0_38, %c0_39] : memref<1x3x8x128xf32, #tpu.memory_space<vmem>>, vector<1x1x8x128xf32>
      %70 = vector.shape_cast %69 : vector<1x1x8x128xf32> to vector<8x128xf32>
      %71 = vector.shape_cast %68 : vector<8x128xf32> to vector<1x1x8x128xf32>
      tpu.vector_store %arg4[%c0_36, %c2_37, %c0_38, %c0_39], %71 {strides = array<i32>} : memref<1x3x8x128xf32, #tpu.memory_space<vmem>>, vector<1x1x8x128xf32>,
    } else {
    }
    %c16_i32_4 = arith.constant 16 : i32
    %10 = arith.cmpi sgt, %6, %c16_i32_4 : i32
    %11 = arith.extui %10 : i1 to i32
    %c0_i32_5 = arith.constant 0 : i32
    %12 = arith.cmpi ne, %11, %c0_i32_5 : i32
    scf.if %12 {
      %cst = arith.constant 0.000000e+00 : f32
      %13 = vector.broadcast %cst : f32 to vector<8x128xf32>
      %c0_i32_6 = arith.constant 0 : i32
      %c8_i32 = arith.constant 8 : i32
      %14 = arith.muli %c0_i32_6, %c8_i32 : i32
      %15 = tpu.assume_multiple %14, 8 : i32
      %16 = arith.index_cast %15 : i32 to index
      %c0 = arith.constant 0 : index
      %17 = vector.load %arg2[%16, %c0] : memref<16x128xf32, #tpu.memory_space<vmem>>, vector<8x128xf32>
      %18 = arith.index_cast %15 : i32 to index
      %c0_7 = arith.constant 0 : index
      %19 = vector.load %arg3[%18, %c0_7] : memref<16x128xf32, #tpu.memory_space<vmem>>, vector<8x128xf32>
      %20 = tpu.iota {dimensions = array<i32: 0>} : vector<8x128xi32>
      %21 = arith.addi %5, %15 : i32
      %22 = vector.broadcast %21 : i32 to vector<8x128xi32>
      %23 = arith.addi %22, %20 : vector<8x128xi32>
      %c16_i32_8 = arith.constant 16 : i32
      %24 = vector.broadcast %c16_i32_8 : i32 to vector<8x128xi32>
      %25 = arith.cmpi slt, %23, %24 : vector<8x128xi32>
      %cst_9 = arith.constant 0.000000e+00 : f32
      %26 = vector.broadcast %cst_9 : f32 to vector<8x128xf32>
      %27 = arith.select %25, %17, %26 : vector<8x128xi1>, vector<8x128xf32>
      %cst_10 = arith.constant 0.000000e+00 : f32
      %28 = vector.broadcast %cst_10 : f32 to vector<8x128xf32>
      %29 = arith.select %25, %19, %28 : vector<8x128xi1>, vector<8x128xf32>
      %cst_11 = arith.constant 5.000000e-01 : f32
      %30 = vector.broadcast %cst_11 : f32 to vector<8x128xf32>
      %31 = arith.cmpf ogt, %29, %30 : vector<8x128xf32>
      %cst_12 = arith.constant 1.000000e+00 : f32
      %32 = vector.broadcast %cst_12 : f32 to vector<8x128xf32>
      %33 = arith.subf %32, %27 : vector<8x128xf32>
      %34 = arith.select %31, %27, %33 : vector<8x128xi1>, vector<8x128xf32>
      %35 = math.log %34 : vector<8x128xf32>
      %cst_13 = arith.constant -1.000000e+02 : f32
      %36 = vector.broadcast %cst_13 : f32 to vector<8x128xf32>
      %37 = arith.maximumf %35, %36 : vector<8x128xf32>
      %38 = arith.extui %31 : vector<8x128xi1> to vector<8x128xi32>
      %39 = arith.sitofp %38 : vector<8x128xi32> to vector<8x128xf32>
      %40 = arith.addf %13, %39 : vector<8x128xf32>
      %41 = arith.addf %13, %37 : vector<8x128xf32>
      %42 = arith.mulf %39, %37 : vector<8x128xf32>
      %43 = arith.addf %13, %42 : vector<8x128xf32>
      %c1_i32_14 = arith.constant 1 : i32
      %c8_i32_15 = arith.constant 8 : i32
      %44 = arith.muli %c1_i32_14, %c8_i32_15 : i32
      %45 = tpu.assume_multiple %44, 8 : i32
      %46 = arith.index_cast %45 : i32 to index
      %c0_16 = arith.constant 0 : index
      %47 = vector.load %arg2[%46, %c0_16] : memref<16x128xf32, #tpu.memory_space<vmem>>, vector<8x128xf32>
      %48 = arith.index_cast %45 : i32 to index
      %c0_17 = arith.constant 0 : index
      %49 = vector.load %arg3[%48, %c0_17] : memref<16x128xf32, #tpu.memory_space<vmem>>, vector<8x128xf32>
      %50 = tpu.iota {dimensions = array<i32: 0>} : vector<8x128xi32>
      %51 = arith.addi %5, %45 : i32
      %52 = vector.broadcast %51 : i32 to vector<8x128xi32>
      %53 = arith.addi %52, %50 : vector<8x128xi32>
      %c16_i32_18 = arith.constant 16 : i32
      %54 = vector.broadcast %c16_i32_18 : i32 to vector<8x128xi32>
      %55 = arith.cmpi slt, %53, %54 : vector<8x128xi32>
      %cst_19 = arith.constant 0.000000e+00 : f32
      %56 = vector.broadcast %cst_19 : f32 to vector<8x128xf32>
      %57 = arith.select %55, %47, %56 : vector<8x128xi1>, vector<8x128xf32>
      %cst_20 = arith.constant 0.000000e+00 : f32
      %58 = vector.broadcast %cst_20 : f32 to vector<8x128xf32>
      %59 = arith.select %55, %49, %58 : vector<8x128xi1>, vector<8x128xf32>
      %cst_21 = arith.constant 5.000000e-01 : f32
      %60 = vector.broadcast %cst_21 : f32 to vector<8x128xf32>
      %61 = arith.cmpf ogt, %59, %60 : vector<8x128xf32>
      %cst_22 = arith.constant 1.000000e+00 : f32
      %62 = vector.broadcast %cst_22 : f32 to vector<8x128xf32>
      %63 = arith.subf %62, %57 : vector<8x128xf32>
      %64 = arith.select %61, %57, %63 : vector<8x128xi1>, vector<8x128xf32>
      %65 = math.log %64 : vector<8x128xf32>
      %cst_23 = arith.constant -1.000000e+02 : f32
      %66 = vector.broadcast %cst_23 : f32 to vector<8x128xf32>
      %67 = arith.maximumf %65, %66 : vector<8x128xf32>
      %68 = arith.extui %61 : vector<8x128xi1> to vector<8x128xi32>
      %69 = arith.sitofp %68 : vector<8x128xi32> to vector<8x128xf32>
      %70 = arith.addf %40, %69 : vector<8x128xf32>
      %71 = arith.addf %41, %67 : vector<8x128xf32>
      %72 = arith.mulf %69, %67 : vector<8x128xf32>
      %73 = arith.addf %43, %72 : vector<8x128xf32>
      %c2_i32 = arith.constant 2 : i32
      %c0_24 = arith.constant 0 : index
      %c0_25 = arith.constant 0 : index
      %c0_26 = arith.constant 0 : index
      %c0_27 = arith.constant 0 : index
      %74 = vector.load %arg4[%c0_24, %c0_25, %c0_26, %c0_27] : memref<1x3x8x128xf32, #tpu.memory_space<vmem>>, vector<1x1x8x128xf32>
      %75 = vector.shape_cast %74 : vector<1x1x8x128xf32> to vector<8x128xf32>
      %76 = arith.addf %75, %70 : vector<8x128xf32>
      %c0_28 = arith.constant 0 : index
      %c0_29 = arith.constant 0 : index
      %c0_30 = arith.constant 0 : index
      %c0_31 = arith.constant 0 : index
      %77 = vector.load %arg4[%c0_28, %c0_29, %c0_30, %c0_31] : memref<1x3x8x128xf32, #tpu.memory_space<vmem>>, vector<1x1x8x128xf32>
      %78 = vector.shape_cast %77 : vector<1x1x8x128xf32> to vector<8x128xf32>
      %79 = vector.shape_cast %76 : vector<8x128xf32> to vector<1x1x8x128xf32>
      tpu.vector_store %arg4[%c0_28, %c0_29, %c0_30, %c0_31], %79 {strides = array<i32>} : memref<1x3x8x128xf32, #tpu.memory_space<vmem>>, vector<1x1x8x128xf32>,
      %c0_32 = arith.constant 0 : index
      %c1 = arith.constant 1 : index
      %c0_33 = arith.constant 0 : index
      %c0_34 = arith.constant 0 : index
      %80 = vector.load %arg4[%c0_32, %c1, %c0_33, %c0_34] : memref<1x3x8x128xf32, #tpu.memory_space<vmem>>, vector<1x1x8x128xf32>
      %81 = vector.shape_cast %80 : vector<1x1x8x128xf32> to vector<8x128xf32>
      %82 = arith.addf %81, %71 : vector<8x128xf32>
      %c0_35 = arith.constant 0 : index
      %c1_36 = arith.constant 1 : index
      %c0_37 = arith.constant 0 : index
      %c0_38 = arith.constant 0 : index
      %83 = vector.load %arg4[%c0_35, %c1_36, %c0_37, %c0_38] : memref<1x3x8x128xf32, #tpu.memory_space<vmem>>, vector<1x1x8x128xf32>
      %84 = vector.shape_cast %83 : vector<1x1x8x128xf32> to vector<8x128xf32>
      %85 = vector.shape_cast %82 : vector<8x128xf32> to vector<1x1x8x128xf32>
      tpu.vector_store %arg4[%c0_35, %c1_36, %c0_37, %c0_38], %85 {strides = array<i32>} : memref<1x3x8x128xf32, #tpu.memory_space<vmem>>, vector<1x1x8x128xf32>,
      %c0_39 = arith.constant 0 : index
      %c2 = arith.constant 2 : index
      %c0_40 = arith.constant 0 : index
      %c0_41 = arith.constant 0 : index
      %86 = vector.load %arg4[%c0_39, %c2, %c0_40, %c0_41] : memref<1x3x8x128xf32, #tpu.memory_space<vmem>>, vector<1x1x8x128xf32>
      %87 = vector.shape_cast %86 : vector<1x1x8x128xf32> to vector<8x128xf32>
      %88 = arith.addf %87, %73 : vector<8x128xf32>
      %c0_42 = arith.constant 0 : index
      %c2_43 = arith.constant 2 : index
      %c0_44 = arith.constant 0 : index
      %c0_45 = arith.constant 0 : index
      %89 = vector.load %arg4[%c0_42, %c2_43, %c0_44, %c0_45] : memref<1x3x8x128xf32, #tpu.memory_space<vmem>>, vector<1x1x8x128xf32>
      %90 = vector.shape_cast %89 : vector<1x1x8x128xf32> to vector<8x128xf32>
      %91 = vector.shape_cast %88 : vector<8x128xf32> to vector<1x1x8x128xf32>
      tpu.vector_store %arg4[%c0_42, %c2_43, %c0_44, %c0_45], %91 {strides = array<i32>} : memref<1x3x8x128xf32, #tpu.memory_space<vmem>>, vector<1x1x8x128xf32>,
    } else {
    }
    return
  }
  func.func @transform_0(%arg0: i32, %arg1: i32) -> (i32, i32) {
    %c1_i32 = arith.constant 1 : i32
    %0 = arith.muli %arg0, %c1_i32 : i32
    %1 = arith.addi %0, %arg1 : i32
    %c0_i32 = arith.constant 0 : i32
    %2 = arith.minsi %1, %c0_i32 : i32
    %c0_i32_0 = arith.constant 0 : i32
    %c0_i32_1 = arith.constant 0 : i32
    return %2, %c0_i32_0 : i32, i32
  }
  func.func @transform_1(%arg0: i32, %arg1: i32) -> (i32, i32) {
    %c1_i32 = arith.constant 1 : i32
    %0 = arith.muli %arg0, %c1_i32 : i32
    %1 = arith.addi %0, %arg1 : i32
    %c0_i32 = arith.constant 0 : i32
    %2 = arith.minsi %1, %c0_i32 : i32
    %c0_i32_0 = arith.constant 0 : i32
    %c0_i32_1 = arith.constant 0 : i32
    return %2, %c0_i32_0 : i32, i32
  }
  func.func @transform_2(%arg0: i32, %arg1: i32) -> (i32, i32, i32, i32) {
    %c0_i32 = arith.constant 0 : i32
    %c0_i32_0 = arith.constant 0 : i32
    %c0_i32_1 = arith.constant 0 : i32
    %c0_i32_2 = arith.constant 0 : i32
    return %arg0, %c0_i32, %c0_i32_0, %c0_i32_1 : i32, i32, i32, i32
  }
}

</mosaic_0001>

<llo_original>
// kernel: tpu_custom_call.1
$region0: #{tpu_custom_call.1}
  #allocation0 [shape = 'u32[]', space=smem, size = 0x4, offset = 0x4, fixed_abs, tag = 'smem constant byte address 0x4 - core index']
  #allocation1 [shape = 'u32[144,128]{1,0:T(1,128)}', space=vmem, size = 0x12000, scoped, tag = 'internal scratch']
  %s0 = inlined_call_operand.hbm [shape: f32[16,128], index: 0, kind: input, shape index: {}]
  %s1 = inlined_call_operand.hbm [shape: f32[16,128], index: 1, kind: input, shape index: {}]
  %s2 = inlined_call_operand.hbm [shape: f32[1,3,8,128], index: 2, kind: output, shape index: {}]
  %s3 = sld [smem:[#allocation0]]
  $region38: #{tpu_custom_call.1} parent=0
    _
  %s5 = ssub.s32 1, %s3
  %s6 = scalar_select 0, %s5, %s3
  $region1: #{tpu_custom_call.1} parent=0
    #allocation2 [shape = 'u8[8192]{0}', space=vmem, size = 0x2000, scoped, tag = 'input window, operand 0, single buffered']
    #allocation3 [shape = 's32[1]{0}', space=sflag, size = 0x4, scoped, tag = 'scoped memory for tpu_custom_call.1']
    #allocation4 [shape = 's32[1]{0}', space=sflag, size = 0x4, scoped, tag = 'scoped memory for tpu_custom_call.1']
    #allocation5 [shape = 'u8[8192]{0}', space=vmem, size = 0x2000, scoped, tag = 'input window, operand 1, single buffered']
    #allocation6 [shape = 's32[1]{0}', space=sflag, size = 0x4, scoped, tag = 'scoped memory for tpu_custom_call.1']
    #allocation7 [shape = 'u8[12288]{0}', space=vmem, size = 0x3000, scoped, tag = 'output window, operand 0, single buffered']
    %7 = vsyncpa [#allocation3], 0
    %8 = vsyncpa [#allocation6], 0
    %9 = vsyncpa [#allocation4], 0
    // Predicated region
    $region2: #{tpu_custom_call.1} parent=1 // pred_check
      _
    $region3: #{tpu_custom_call.1} parent=1 // pred_check_branch
      %11 = sbr.rel (0) target = $region5
    $region4: #{tpu_custom_call.1} parent=1 // pred_region
      %s12 = sadd.s32 0, 0
      %p13 = scmp.lt.s32.totalorder %s12, 0
      %s14 = scalar_select %p13, %s12, 0
      %s15 = smul.u32 2, %s14
      %s17 = ssub.s32 256, 256
      %18 = vsyncadd [#allocation3], %s17
      %s19 = smul.addr %s15, 128
      %s20 = scalar_lea.hbm %s0, %s19
      %s21 = sshll.u32 [#allocation2], 4
      %s22 = int_to_ptr.vmem [resolvable:$true] %s21
      %27 = dma.hbm_to_vmem [thread:$0]  %s20, 256, %s22, [#allocation3], 128, 128, 8
    $region5: #{tpu_custom_call.1} parent=1 // pred_fallthru
      _
    // Predicated region
    $region6: #{tpu_custom_call.1} parent=1 // pred_check
      _
    $region7: #{tpu_custom_call.1} parent=1 // pred_check_branch
      %29 = sbr.rel (0) target = $region9
    $region8: #{tpu_custom_call.1} parent=1 // pred_region
      %s30 = sadd.s32 0, 0
      %p31 = scmp.lt.s32.totalorder %s30, 0
      %s32 = scalar_select %p31, %s30, 0
      %s33 = smul.u32 2, %s32
      %s35 = ssub.s32 256, 256
      %36 = vsyncadd [#allocation6], %s35
      %s37 = smul.addr %s33, 128
      %s38 = scalar_lea.hbm %s1, %s37
      %s39 = sshll.u32 [#allocation5], 4
      %s40 = int_to_ptr.vmem [resolvable:$true] %s39
      %45 = dma.hbm_to_vmem [thread:$0]  %s38, 256, %s40, [#allocation6], 128, 128, 8
    $region9: #{tpu_custom_call.1} parent=1 // pred_fallthru
      _
    // Predicated region
    $region10: #{tpu_custom_call.1} parent=1 // pred_check
      _
    $region11: #{tpu_custom_call.1} parent=1 // pred_check_branch
      %47 = sbr.rel (0) target = $region13
    $region12: #{tpu_custom_call.1} parent=1 // pred_region
      %48 = dma.done [#allocation3], 256
    $region13: #{tpu_custom_call.1} parent=1 // pred_fallthru
      _
    // Predicated region
    $region14: #{tpu_custom_call.1} parent=1 // pred_check
      _
    $region15: #{tpu_custom_call.1} parent=1 // pred_check_branch
      %50 = sbr.rel (0) target = $region17
    $region16: #{tpu_custom_call.1} parent=1 // pred_region
      %51 = dma.done [#allocation6], 256
    $region17: #{tpu_custom_call.1} parent=1 // pred_fallthru
      _
    %s52 = sadd.s32 0, 0
    %p53 = scmp.lt.s32.totalorder %s52, 0
    %s54 = scalar_select %p53, %s52, 0
    %s55 = smul.u32 2, %s54
    %s56 = sadd.s32 0, 0
    %p57 = scmp.lt.s32.totalorder %s56, 0
    %s58 = scalar_select %p57, %s56, 0
    %s59 = smul.u32 2, %s58
    %p60 = scmp.eq.s32.totalorder 0, 0
    // Predicated region
    $region18: #{tpu_custom_call.1} parent=1 // pred_check
      %p61 = pneg %p60
    $region19: #{tpu_custom_call.1} parent=1 // pred_check_branch
      %63 = sbr.rel (%p61) target = $region21
    $region20: #{tpu_custom_call.1} parent=1 // pred_region
      %64 = vst [vmem:[#allocation7] sm:$0xff] 0.0
      %65 = vst [vmem:[#allocation7 + $0x8] sm:$0xff] 0.0
      %66 = vst [vmem:[#allocation7 + $0x10] sm:$0xff] 0.0
    $region21: #{tpu_custom_call.1} parent=1 // pred_fallthru
      _
    %s67 = sadd.s32 0, 0
    %s68 = smul.u32 %s67, 16
    %s69 = sadd.s32 %s68, 16
    %p70 = scmp.le.s32.totalorder %s69, 16
    // Predicated region
    $region22: #{tpu_custom_call.1} parent=1 // pred_check
      %p71 = pneg %p70
    $region23: #{tpu_custom_call.1} parent=1 // pred_check_branch
      %73 = sbr.rel (%p71) target = $region25
    $region24: #{tpu_custom_call.1} parent=1 // pred_region
      %v74 = vld [vmem:[#allocation2] sm:$0xff]
      %v75 = vld [vmem:[#allocation5] sm:$0xff]
      %vm76 = vcmp.gt.f32.partialorder %v75, 0.5
      %v77 = vsub.f32 1.0, %v74
      %v78 = vsel %vm76, %v74, %v77
      %v79 = vlog2.pop %v78
      %v80 = vmul.f32 %v79, 0.6931472
      %v81 = vmax.f32 %v80, -100.0
      %v82 = vsel %vm76, 1, 0
      %v83 = vcvt.s32.f32 %v82
      %v84 = vadd.f32 %v83, 0.0
      %v85 = vadd.f32 %v81, 0.0
      %v86 = vmul.f32 %v83, %v81
      %v87 = vadd.f32 %v86, 0.0
      %s88 = scalar_lea.vmem [#allocation2], 8
      %v89 = vld [vmem:[%s88] sm:$0xff]
      %s90 = scalar_lea.vmem [#allocation5], 8
      %v91 = vld [vmem:[%s90] sm:$0xff]
      %vm92 = vcmp.gt.f32.partialorder %v91, 0.5
      %v93 = vsub.f32 1.0, %v89
      %v94 = vsel %vm92, %v89, %v93
      %v95 = vlog2.pop %v94
      %v96 = vmul.f32 %v95, 0.6931472
      %v97 = vmax.f32 %v96, -100.0
      %v98 = vsel %vm92, 1, 0
      %v99 = vcvt.s32.f32 %v98
      %v100 = vadd.f32 %v84, %v99
      %v101 = vadd.f32 %v85, %v97
      %v102 = vmul.f32 %v99, %v97
      %v103 = vadd.f32 %v87, %v102
      %v104 = vld [vmem:[#allocation7] sm:$0xff]
      %v105 = vadd.f32 %v104, %v100
      %106 = vst [vmem:[#allocation7] sm:$0xff] %v105
      %s107 = scalar_lea.vmem [#allocation7], 8
      %v108 = vld [vmem:[%s107] sm:$0xff]
      %v109 = vadd.f32 %v108, %v101
      %110 = vst [vmem:[%s107] sm:$0xff] %v109
      %s111 = scalar_lea.vmem [#allocation7], 16
      %v112 = vld [vmem:[%s111] sm:$0xff]
      %v113 = vadd.f32 %v112, %v103
      %114 = vst [vmem:[%s111] sm:$0xff] %v113
    $region25: #{tpu_custom_call.1} parent=1 // pred_fallthru
      _
    %p115 = scmp.gt.s32.totalorder %s69, 16
    // Predicated region
    $region26: #{tpu_custom_call.1} parent=1 // pred_check
      %p116 = pneg %p115
    $region27: #{tpu_custom_call.1} parent=1 // pred_check_branch
      %118 = sbr.rel (%p116) target = $region29
    $region28: #{tpu_custom_call.1} parent=1 // pred_region
      %v119 = vld [vmem:[#allocation2] sm:$0xff]
      %v120 = vld [vmem:[#allocation5] sm:$0xff]
      %v121 = vlaneseq
      %v122 = vshrl.u32 %v121, 7
      %s123 = sadd.s32 %s68, 0
      %v124 = vstv %s123
      %v125 = vadd.s32 %v124, %v122
      %vm126 = vcmp.lt.s32.totalorder %v125, 16
      %v127 = vsel %vm126, %v119, 0.0
      %v128 = vsel %vm126, %v120, 0.0
      %vm129 = vcmp.gt.f32.partialorder %v128, 0.5
      %v130 = vsub.f32 1.0, %v127
      %v131 = vsel %vm129, %v127, %v130
      %v132 = vlog2.pop %v131
      %v133 = vmul.f32 %v132, 0.6931472
      %v134 = vmax.f32 %v133, -100.0
      %v135 = vsel %vm129, 1, 0
      %v136 = vcvt.s32.f32 %v135
      %v137 = vadd.f32 %v136, 0.0
      %v138 = vadd.f32 %v134, 0.0
      %v139 = vmul.f32 %v136, %v134
      %v140 = vadd.f32 %v139, 0.0
      %s141 = scalar_lea.vmem [#allocation2], 8
      %v142 = vld [vmem:[%s141] sm:$0xff]
      %s143 = scalar_lea.vmem [#allocation5], 8
      %v144 = vld [vmem:[%s143] sm:$0xff]
      %s145 = sadd.s32 %s68, 8
      %v146 = vstv %s145
      %v147 = vadd.s32 %v146, %v122
      %vm148 = vcmp.lt.s32.totalorder %v147, 16
      %v149 = vsel %vm148, %v142, 0.0
      %v150 = vsel %vm148, %v144, 0.0
      %vm151 = vcmp.gt.f32.partialorder %v150, 0.5
      %v152 = vsub.f32 1.0, %v149
      %v153 = vsel %vm151, %v149, %v152
      %v154 = vlog2.pop %v153
      %v155 = vmul.f32 %v154, 0.6931472
      %v156 = vmax.f32 %v155, -100.0
      %v157 = vsel %vm151, 1, 0
      %v158 = vcvt.s32.f32 %v157
      %v159 = vadd.f32 %v137, %v158
      %v160 = vadd.f32 %v138, %v156
      %v161 = vmul.f32 %v158, %v156
      %v162 = vadd.f32 %v140, %v161
      %v163 = vld [vmem:[#allocation7] sm:$0xff]
      %v164 = vadd.f32 %v163, %v159
      %165 = vst [vmem:[#allocation7] sm:$0xff] %v164
      %s166 = scalar_lea.vmem [#allocation7], 8
      %v167 = vld [vmem:[%s166] sm:$0xff]
      %v168 = vadd.f32 %v167, %v160
      %169 = vst [vmem:[%s166] sm:$0xff] %v168
      %s170 = scalar_lea.vmem [#allocation7], 16
      %v171 = vld [vmem:[%s170] sm:$0xff]
      %v172 = vadd.f32 %v171, %v162
      %173 = vst [vmem:[%s170] sm:$0xff] %v172
    $region29: #{tpu_custom_call.1} parent=1 // pred_fallthru
      _
    // Predicated region
    $region30: #{tpu_custom_call.1} parent=1 // pred_check
      _
    $region31: #{tpu_custom_call.1} parent=1 // pred_check_branch
      %175 = sbr.rel (0) target = $region33
    $region32: #{tpu_custom_call.1} parent=1 // pred_region
      %s177 = ssub.s32 384, 384
      %178 = vsyncadd [#allocation4], %s177
      %s179 = sshll.u32 [#allocation7], 4
      %s180 = int_to_ptr.vmem [resolvable:$true] %s179
      %185 = dma.vmem_to_hbm [thread:$0]  %s180, 384, %s2, [#allocation4], 128, 128, 8
    $region33: #{tpu_custom_call.1} parent=1 // pred_fallthru
      _
    // Predicated region
    $region34: #{tpu_custom_call.1} parent=1 // pred_check
      _
    $region35: #{tpu_custom_call.1} parent=1 // pred_check_branch
      %187 = sbr.rel (0) target = $region37
    $region36: #{tpu_custom_call.1} parent=1 // pred_region
      %188 = dma.done [#allocation4], 384
    $region37: #{tpu_custom_call.1} parent=1 // pred_fallthru
      _
    %189 = vsyncpa [#allocation3], 1
    %190 = vsyncpa [#allocation6], 1
    %191 = vsyncpa [#allocation4], 1

</llo_original>
